<compile_context>
chip_gen: v7x
topology: tpu7x:2x2x1
jax: 0.10.0
libtpu: 0.0.40
codegen_flags: <defaults>
</compile_context>

<pallas_src>
import functools

import numpy as np
import jax
import jax.numpy as jnp
from jax.experimental import pallas as pl
from jax.experimental.pallas import tpu as pltpu

E_LAMBDA = 1e-4   # SimAM lambda
BN_EPS = 1e-5


# ------------------------------ kernel ------------------------------

def _kernel_sigmoid(x):
    # Single EUP op (tanh) instead of exp + reciprocal; mathematically exact.
    return 0.5 * jnp.tanh(0.5 * x) + 0.5


def _kernel_simam(x, hw):
    # x: (R, HW); per-row (= per (batch, channel)) reductions over HW lanes.
    n = float(hw - 1)
    mu = jnp.sum(x, axis=1, keepdims=True) * (1.0 / float(hw))
    xms = (x - mu) ** 2
    denom = 4.0 * (jnp.sum(xms, axis=1, keepdims=True) * (1.0 / n) + E_LAMBDA)
    y = xms * pl.reciprocal(denom, approx=True) + 0.5     # EUP-slot divide
    return x * _kernel_sigmoid(y)


def _diff_kernel(x_ref, w_ref, b_ref, q_ref, o_ref):
    # x_ref: (R, HW)   activation rows for a group of whole images
    # w_ref: (R, R)    block-diagonal 1x1-conv weight with BN scale folded in
    # b_ref: (R, 1)    folded BN bias (per row)
    # q_ref: (HW, HW)  edge matrix  I - P  (3x3 avg-pool, count_include_pad)
    hw = x_ref.shape[-1]

    x = _kernel_simam(x_ref[...], hw)                                 # (R, HW)

    # edge = x - avgpool3x3(x)  ==  x @ (I - P), one MXU matmul.
    edge = jnp.dot(x, q_ref[...], preferred_element_type=jnp.float32)

    # 1x1 conv + folded BatchNorm (block-diagonal per image) + sigmoid.
    pre = jnp.dot(w_ref[...], edge, preferred_element_type=jnp.float32) + b_ref[...]
    weight = _kernel_sigmoid(pre)

    out = (weight + 1.0) * x                                          # w*x + x
    o_ref[...] = _kernel_simam(out, hw)                               # lane-dense store


# ------------------------------ wrapper ------------------------------

@functools.lru_cache(maxsize=8)
def _edge_matrix(H, W):
    """(HW, HW) matrix Q = I - P with P[i, j] = 1/9 if pixel i lies in the 3x3
    neighborhood of pixel j (count_include_pad=True -> always divide by 9), so
    x @ Q == x - avgpool3x3(x) for row-major flattened rows."""
    idx = np.arange(H * W)
    hi, wi = idx // W, idx % W
    dh = np.abs(hi[:, None] - hi[None, :])
    dw = np.abs(wi[:, None] - wi[None, :])
    p = ((dh <= 1) & (dw <= 1)).astype(np.float32) / 9.0
    return np.eye(H * W, dtype=np.float32) - p


def _choose_images_per_block(B, C):
    """Largest whole-image row group (divisor of B) whose row count is either
    the full batch (block == full array is always layout-legal) or a multiple
    of 8 sublanes, capped at ~256 rows per block."""
    target = max(1, 256 // max(C, 1))
    for ipb in range(min(B, target), 0, -1):
        if B % ipb == 0 and (ipb == B or (ipb * C) % 8 == 0):
            return ipb
    return B


def diff_forward(x, w_folded, b_folded):
    """x: (B, C, H, W) f32; w_folded: (C, C) conv weight with BN scale folded;
    b_folded: (C,) folded BN bias."""
    B, C, H, W = x.shape
    HW = H * W
    ipb = _choose_images_per_block(B, C)
    R = ipb * C
    n_blocks = B // ipb

    x_flat = x.reshape(B * C, HW)
    # Block-diagonal folded 1x1-conv weight: one (C,C) copy per image in a
    # row block (same block works for every grid step).
    w_blk = jnp.kron(jnp.eye(ipb, dtype=w_folded.dtype), w_folded)    # (R, R)
    b_blk = jnp.tile(b_folded, ipb).reshape(R, 1)                     # (R, 1)
    q = jnp.asarray(_edge_matrix(H, W))                               # (HW, HW)

    # Explicit scoped-VMEM limit (generous for current sizes; scales with HW).
    vmem_need = 4 * (2 * HW * HW + 4 * R * HW + 2 * R * R + 8 * 128) + (1 << 20)
    vmem_limit = int(min(max(vmem_need, 16 << 20), 48 << 20))

    out = pl.pallas_call(
        _diff_kernel,
        out_shape=jax.ShapeDtypeStruct((B * C, HW), jnp.float32),
        grid=(n_blocks,),
        in_specs=[
            pl.BlockSpec((R, HW), lambda i: (i, 0)),   # activation row group
            pl.BlockSpec((R, R), lambda i: (0, 0)),    # block-diag conv+BN weight
            pl.BlockSpec((R, 1), lambda i: (0, 0)),    # folded bias
            pl.BlockSpec((HW, HW), lambda i: (0, 0)),  # edge (I - pool) matrix
        ],
        out_specs=pl.BlockSpec((R, HW), lambda i: (i, 0)),
        compiler_params=pltpu.CompilerParams(
            dimension_semantics=("parallel",),          # megacore over row groups
            vmem_limit_bytes=vmem_limit,
        ),
    )(x_flat, w_blk, b_blk, q)
    return out.reshape(B, C, H, W)


# --------------------------- pure-JAX reference ---------------------------

def _ref_simam(x):
    _, _, h, w = x.shape
    n = h * w - 1
    mu = x.mean(axis=(2, 3), keepdims=True)
    xms = (x - mu) ** 2
    y = xms / (4.0 * (xms.sum(axis=(2, 3), keepdims=True) / n + E_LAMBDA)) + 0.5
    return x * jax.nn.sigmoid(y)


def _ref_pool(x):
    B, C, H, W = x.shape
    xp = jnp.pad(x, ((0, 0), (0, 0), (1, 1), (1, 1)))
    acc = jnp.zeros_like(x)
    for i in range(3):
        for j in range(3):
            acc = acc + xp[:, :, i:i + H, j:j + W]
    return acc / 9.0


def _ref_diff(x, conv_w, conv_b, gamma, beta, rmean, rvar):
    x = _ref_simam(x)
    edge = x - _ref_pool(x)
    y = jnp.einsum('oc,bchw->bohw', conv_w, edge) + conv_b[None, :, None, None]
    y = (y - rmean[None, :, None, None]) / jnp.sqrt(rvar[None, :, None, None] + BN_EPS)
    y = y * gamma[None, :, None, None] + beta[None, :, None, None]
    weight = jax.nn.sigmoid(y)
    out = weight * x + x
    return _ref_simam(out)


# ------------------------------- main -------------------------------

if __name__ == "__main__":
    key = jax.random.PRNGKey(0)
    B, C, H, W = 2, 4, 16, 16
    kx, kw, kb, kg, kbe, km, kv = jax.random.split(key, 7)

    x = jax.random.normal(kx, (B, C, H, W), jnp.float32)
    conv_w = jax.random.normal(kw, (C, C), jnp.float32) * 0.3     # 1x1 conv kernel
    conv_b = jax.random.normal(kb, (C,), jnp.float32) * 0.1
    gamma = jax.random.uniform(kg, (C,), jnp.float32, 0.5, 1.5)   # BN params (inference)
    beta = jax.random.normal(kbe, (C,), jnp.float32) * 0.1
    rmean = jax.random.normal(km, (C,), jnp.float32) * 0.1
    rvar = jax.random.uniform(kv, (C,), jnp.float32, 0.5, 1.5)

    # Fold BatchNorm (inference mode) into the 1x1 conv.
    scale = gamma / jnp.sqrt(rvar + BN_EPS)
    w_folded = conv_w * scale[:, None]
    b_folded = scale * (conv_b - rmean) + beta

    out = diff_forward(x, w_folded, b_folded)
    out = jax.block_until_ready(out)

    ref = _ref_diff(x, conv_w, conv_b, gamma, beta, rmean, rvar)
    err = float(jnp.max(jnp.abs(out - ref)))
    # Tolerance covers the EUP approximate reciprocal in the SimAM denominator
    # and MXU matmul rounding; sigmoid itself is exact (tanh form).
    if out.shape != (B, C, H, W) or not jnp.isfinite(err) or err > 5e-3:
        raise AssertionError(f"mismatch vs reference: max abs err {err}")
    print("KERNEL_OK")
</pallas_src>

<mosaic_0001>
module attributes {stable_mosaic.version = 11 : i64} {
  func.func @_diff_kernel(%arg0: i32, %arg1: memref<8x256xf32, #tpu.memory_space<vmem>>, %arg2: memref<8x8xf32, #tpu.memory_space<vmem>>, %arg3: memref<8x1xf32, #tpu.memory_space<vmem>>, %arg4: memref<256x256xf32, #tpu.memory_space<vmem>>, %arg5: memref<8x256xf32, #tpu.memory_space<vmem>>) attributes {dimension_semantics = [#tpu.dimension_semantics<parallel>], iteration_bounds = array<i64: 1>, scalar_prefetch = 0 : i64, scratch_operands = 0 : i64, tpu.core_type = #tpu.core_type<tc>, window_params = [{transform_indices = @transform_0, window_bounds = array<i64: 8, 256>}, {pipeline_mode = #tpu.pipeline_mode<synchronous>, transform_indices = @transform_1, window_bounds = array<i64: 8, 8>}, {pipeline_mode = #tpu.pipeline_mode<synchronous>, transform_indices = @transform_2, window_bounds = array<i64: 8, 1>}, {pipeline_mode = #tpu.pipeline_mode<synchronous>, transform_indices = @transform_3, window_bounds = array<i64: 256, 256>}, {transform_indices = @transform_4, window_bounds = array<i64: 8, 256>}]} {
    %c0 = arith.constant 0 : index
    %c0_0 = arith.constant 0 : index
    %0 = vector.load %arg1[%c0, %c0_0] : memref<8x256xf32, #tpu.memory_space<vmem>>, vector<8x256xf32>
    %cst = arith.constant dense<0.000000e+00> : vector<8xf32>
    %1 = vector.multi_reduction <add>, %0, %cst [1] : vector<8x256xf32> to vector<8xf32>
    %2 = vector.shape_cast %1 : vector<8xf32> to vector<8x1xf32>
    %cst_1 = arith.constant 3.906250e-03 : f32
    %3 = vector.broadcast %cst_1 : f32 to vector<8x1xf32>
    %4 = arith.mulf %2, %3 : vector<8x1xf32>
    %5 = vector.broadcast %4 : vector<8x1xf32> to vector<8x256xf32>
    %6 = arith.subf %0, %5 : vector<8x256xf32>
    %7 = arith.mulf %6, %6 : vector<8x256xf32>
    %cst_2 = arith.constant dense<0.000000e+00> : vector<8xf32>
    %8 = vector.multi_reduction <add>, %7, %cst_2 [1] : vector<8x256xf32> to vector<8xf32>
    %9 = vector.shape_cast %8 : vector<8xf32> to vector<8x1xf32>
    %cst_3 = arith.constant 0.00392156886 : f32
    %10 = vector.broadcast %cst_3 : f32 to vector<8x1xf32>
    %11 = arith.mulf %9, %10 : vector<8x1xf32>
    %cst_4 = arith.constant 9.99999974E-5 : f32
    %12 = vector.broadcast %cst_4 : f32 to vector<8x1xf32>
    %13 = arith.addf %11, %12 : vector<8x1xf32>
    %cst_5 = arith.constant 4.000000e+00 : f32
    %14 = vector.broadcast %cst_5 : f32 to vector<8x1xf32>
    %15 = arith.mulf %14, %13 : vector<8x1xf32>
    %16 = tpu.reciprocal %15 {approx = true} : vector<8x1xf32> -> vector<8x1xf32>
    %17 = vector.broadcast %16 : vector<8x1xf32> to vector<8x256xf32>
    %18 = arith.mulf %7, %17 : vector<8x256xf32>
    %cst_6 = arith.constant 5.000000e-01 : f32
    %19 = vector.broadcast %cst_6 : f32 to vector<8x256xf32>
    %20 = arith.addf %18, %19 : vector<8x256xf32>
    %cst_7 = arith.constant 5.000000e-01 : f32
    %21 = vector.broadcast %cst_7 : f32 to vector<8x256xf32>
    %22 = arith.mulf %21, %20 : vector<8x256xf32>
    %23 = math.tanh %22 : vector<8x256xf32>
    %cst_8 = arith.constant 5.000000e-01 : f32
    %24 = vector.broadcast %cst_8 : f32 to vector<8x256xf32>
    %25 = arith.mulf %24, %23 : vector<8x256xf32>
    %cst_9 = arith.constant 5.000000e-01 : f32
    %26 = vector.broadcast %cst_9 : f32 to vector<8x256xf32>
    %27 = arith.addf %25, %26 : vector<8x256xf32>
    %28 = arith.mulf %0, %27 : vector<8x256xf32>
    %c0_10 = arith.constant 0 : index
    %c0_11 = arith.constant 0 : index
    %29 = vector.load %arg4[%c0_10, %c0_11] : memref<256x256xf32, #tpu.memory_space<vmem>>, vector<256x256xf32>
    %cst_12 = arith.constant dense<0.000000e+00> : vector<8x256xf32>
    %30 = tpu.matmul %28, %29, %cst_12 {dimension_numbers = #tpu.dot_dimension_numbers<[1], [0], [0], [1], [0, 0, 1, 1], [], []>} : vector<8x256xf32>, vector<256x256xf32>, vector<8x256xf32> -> vector<8x256xf32>
    %c0_13 = arith.constant 0 : index
    %c0_14 = arith.constant 0 : index
    %31 = vector.load %arg2[%c0_13, %c0_14] : memref<8x8xf32, #tpu.memory_space<vmem>>, vector<8x8xf32>
    %cst_15 = arith.constant dense<0.000000e+00> : vector<8x256xf32>
    %32 = tpu.matmul %31, %30, %cst_15 {dimension_numbers = #tpu.dot_dimension_numbers<[1], [0], [0], [1], [0, 0, 1, 1], [], []>} : vector<8x8xf32>, vector<8x256xf32>, vector<8x256xf32> -> vector<8x256xf32>
    %c0_16 = arith.constant 0 : index
    %c0_17 = arith.constant 0 : index
    %33 = vector.load %arg3[%c0_16, %c0_17] : memref<8x1xf32, #tpu.memory_space<vmem>>, vector<8x1xf32>
    %34 = vector.broadcast %33 : vector<8x1xf32> to vector<8x256xf32>
    %35 = arith.addf %32, %34 : vector<8x256xf32>
    %cst_18 = arith.constant 5.000000e-01 : f32
    %36 = vector.broadcast %cst_18 : f32 to vector<8x256xf32>
    %37 = arith.mulf %36, %35 : vector<8x256xf32>
    %38 = math.tanh %37 : vector<8x256xf32>
    %cst_19 = arith.constant 5.000000e-01 : f32
    %39 = vector.broadcast %cst_19 : f32 to vector<8x256xf32>
    %40 = arith.mulf %39, %38 : vector<8x256xf32>
    %cst_20 = arith.constant 5.000000e-01 : f32
    %41 = vector.broadcast %cst_20 : f32 to vector<8x256xf32>
    %42 = arith.addf %40, %41 : vector<8x256xf32>
    %cst_21 = arith.constant 1.000000e+00 : f32
    %43 = vector.broadcast %cst_21 : f32 to vector<8x256xf32>
    %44 = arith.addf %42, %43 : vector<8x256xf32>
    %45 = arith.mulf %44, %28 : vector<8x256xf32>
    %cst_22 = arith.constant dense<0.000000e+00> : vector<8xf32>
    %46 = vector.multi_reduction <add>, %45, %cst_22 [1] : vector<8x256xf32> to vector<8xf32>
    %47 = vector.shape_cast %46 : vector<8xf32> to vector<8x1xf32>
    %cst_23 = arith.constant 3.906250e-03 : f32
    %48 = vector.broadcast %cst_23 : f32 to vector<8x1xf32>
    %49 = arith.mulf %47, %48 : vector<8x1xf32>
    %50 = vector.broadcast %49 : vector<8x1xf32> to vector<8x256xf32>
    %51 = arith.subf %45, %50 : vector<8x256xf32>
    %52 = arith.mulf %51, %51 : vector<8x256xf32>
    %cst_24 = arith.constant dense<0.000000e+00> : vector<8xf32>
    %53 = vector.multi_reduction <add>, %52, %cst_24 [1] : vector<8x256xf32> to vector<8xf32>
    %54 = vector.shape_cast %53 : vector<8xf32> to vector<8x1xf32>
    %cst_25 = arith.constant 0.00392156886 : f32
    %55 = vector.broadcast %cst_25 : f32 to vector<8x1xf32>
    %56 = arith.mulf %54, %55 : vector<8x1xf32>
    %cst_26 = arith.constant 9.99999974E-5 : f32
    %57 = vector.broadcast %cst_26 : f32 to vector<8x1xf32>
    %58 = arith.addf %56, %57 : vector<8x1xf32>
    %cst_27 = arith.constant 4.000000e+00 : f32
    %59 = vector.broadcast %cst_27 : f32 to vector<8x1xf32>
    %60 = arith.mulf %59, %58 : vector<8x1xf32>
    %61 = tpu.reciprocal %60 {approx = true} : vector<8x1xf32> -> vector<8x1xf32>
    %62 = vector.broadcast %61 : vector<8x1xf32> to vector<8x256xf32>
    %63 = arith.mulf %52, %62 : vector<8x256xf32>
    %cst_28 = arith.constant 5.000000e-01 : f32
    %64 = vector.broadcast %cst_28 : f32 to vector<8x256xf32>
    %65 = arith.addf %63, %64 : vector<8x256xf32>
    %cst_29 = arith.constant 5.000000e-01 : f32
    %66 = vector.broadcast %cst_29 : f32 to vector<8x256xf32>
    %67 = arith.mulf %66, %65 : vector<8x256xf32>
    %68 = math.tanh %67 : vector<8x256xf32>
    %cst_30 = arith.constant 5.000000e-01 : f32
    %69 = vector.broadcast %cst_30 : f32 to vector<8x256xf32>
    %70 = arith.mulf %69, %68 : vector<8x256xf32>
    %cst_31 = arith.constant 5.000000e-01 : f32
    %71 = vector.broadcast %cst_31 : f32 to vector<8x256xf32>
    %72 = arith.addf %70, %71 : vector<8x256xf32>
    %73 = arith.mulf %45, %72 : vector<8x256xf32>
    %c0_32 = arith.constant 0 : index
    %c0_33 = arith.constant 0 : index
    %74 = vector.load %arg5[%c0_32, %c0_33] : memref<8x256xf32, #tpu.memory_space<vmem>>, vector<8x256xf32>
    tpu.vector_store %arg5[%c0_32, %c0_33], %73 {strides = array<i32>} : memref<8x256xf32, #tpu.memory_space<vmem>>, vector<8x256xf32>,
    return
  }
  func.func @transform_0(%arg0: i32) -> (i32, i32) {
    %c0_i32 = arith.constant 0 : i32
    %c0_i32_0 = arith.constant 0 : i32
    return %arg0, %c0_i32 : i32, i32
  }
  func.func @transform_1(%arg0: i32) -> (i32, i32) {
    %c0_i32 = arith.constant 0 : i32
    %c0_i32_0 = arith.constant 0 : i32
    %c0_i32_1 = arith.constant 0 : i32
    return %c0_i32, %c0_i32_0 : i32, i32
  }
  func.func @transform_2(%arg0: i32) -> (i32, i32) {
    %c0_i32 = arith.constant 0 : i32
    %c0_i32_0 = arith.constant 0 : i32
    %c0_i32_1 = arith.constant 0 : i32
    return %c0_i32, %c0_i32_0 : i32, i32
  }
  func.func @transform_3(%arg0: i32) -> (i32, i32) {
    %c0_i32 = arith.constant 0 : i32
    %c0_i32_0 = arith.constant 0 : i32
    %c0_i32_1 = arith.constant 0 : i32
    return %c0_i32, %c0_i32_0 : i32, i32
  }
  func.func @transform_4(%arg0: i32) -> (i32, i32) {
    %c0_i32 = arith.constant 0 : i32
    %c0_i32_0 = arith.constant 0 : i32
    return %arg0, %c0_i32 : i32, i32
  }
}

</mosaic_0001>

<llo_original>
// kernel: tpu_custom_call.1
$region0: #{tpu_custom_call.1}
  #allocation0 [shape = 'u32[]', space=smem, size = 0x4, offset = 0x4, fixed_abs, tag = 'smem constant byte address 0x4 - core index']
  #allocation1 [shape = 'u32[144,128]{1,0:T(1,128)}', space=vmem, size = 0x12000, scoped, tag = 'internal scratch']
  %s0 = inlined_call_operand.hbm [shape: f32[8,256], index: 0, kind: input, shape index: {}]
  %s1 = inlined_call_operand.vmem [shape: f32[8,8], index: 1, kind: input, shape index: {}]
  %s2 = inlined_call_operand.vmem [shape: f32[8,1], index: 2, kind: input, shape index: {}]
  %s3 = inlined_call_operand.hbm [shape: f32[256,256], index: 3, kind: input, shape index: {}]
  %s4 = inlined_call_operand.hbm [shape: f32[8,256], index: 4, kind: output, shape index: {}]
  %s5 = sld [smem:[#allocation0]]
  $region34: #{tpu_custom_call.1} parent=0
    _
  %s7 = ssub.s32 1, %s5
  %s8 = scalar_select 0, %s7, %s5
  $region1: #{tpu_custom_call.1} parent=0
    #allocation2 [shape = 'u8[8192]{0}', space=vmem, size = 0x2000, scoped, tag = 'input window, operand 0, single buffered']
    #allocation3 [shape = 's32[1]{0}', space=sflag, size = 0x4, scoped, tag = 'scoped memory for tpu_custom_call.1']
    #allocation4 [shape = 's32[1]{0}', space=sflag, size = 0x4, scoped, tag = 'scoped memory for tpu_custom_call.1']
    #allocation5 [shape = 'u8[262144]{0}', space=vmem, size = 0x40000, scoped, tag = 'input window, operand 3, single buffered']
    #allocation6 [shape = 's32[1]{0}', space=sflag, size = 0x4, scoped, tag = 'scoped memory for tpu_custom_call.1']
    #allocation7 [shape = 'u8[8192]{0}', space=vmem, size = 0x2000, scoped, tag = 'output window, operand 0, single buffered']
    %9 = vsyncpa [#allocation3], 0
    %10 = vsyncpa [#allocation6], 0
    %11 = vsyncpa [#allocation4], 0
    // Predicated region
    $region2: #{tpu_custom_call.1} parent=1 // pred_check
      _
    $region3: #{tpu_custom_call.1} parent=1 // pred_check_branch
      %13 = sbr.rel (0) target = $region5
    $region4: #{tpu_custom_call.1} parent=1 // pred_region
      %s15 = ssub.s32 256, 256
      %16 = vsyncadd [#allocation3], %s15
      %s18 = sshll.u32 [#allocation2], 4
      %s19 = int_to_ptr.vmem [resolvable:$true] %s18
      %21 = dma.hbm_to_vmem [thread:$0]  %s0, 256, %s19, [#allocation3]
    $region5: #{tpu_custom_call.1} parent=1 // pred_fallthru
      _
    // Predicated region
    $region6: #{tpu_custom_call.1} parent=1 // pred_check
      _
    $region7: #{tpu_custom_call.1} parent=1 // pred_check_branch
      %23 = sbr.rel (0) target = $region9
    $region8: #{tpu_custom_call.1} parent=1 // pred_region
      _
    $region9: #{tpu_custom_call.1} parent=1 // pred_fallthru
      _
    // Predicated region
    $region10: #{tpu_custom_call.1} parent=1 // pred_check
      _
    $region11: #{tpu_custom_call.1} parent=1 // pred_check_branch
      %25 = sbr.rel (0) target = $region13
    $region12: #{tpu_custom_call.1} parent=1 // pred_region
      _
    $region13: #{tpu_custom_call.1} parent=1 // pred_fallthru
      _
    // Predicated region
    $region14: #{tpu_custom_call.1} parent=1 // pred_check
      _
    $region15: #{tpu_custom_call.1} parent=1 // pred_check_branch
      %27 = sbr.rel (0) target = $region17
    $region16: #{tpu_custom_call.1} parent=1 // pred_region
      %s29 = ssub.s32 8192, 8192
      %30 = vsyncadd [#allocation6], %s29
      %s31 = sshll.u32 [#allocation5], 4
      %s32 = int_to_ptr.vmem [resolvable:$true] %s31
      %37 = dma.hbm_to_vmem [thread:$0]  %s3, 8192, %s32, [#allocation6], 256, 256, 16
    $region17: #{tpu_custom_call.1} parent=1 // pred_fallthru
      _
    // Predicated region
    $region18: #{tpu_custom_call.1} parent=1 // pred_check
      _
    $region19: #{tpu_custom_call.1} parent=1 // pred_check_branch
      %39 = sbr.rel (0) target = $region21
    $region20: #{tpu_custom_call.1} parent=1 // pred_region
      %40 = dma.done [#allocation3], 256
    $region21: #{tpu_custom_call.1} parent=1 // pred_fallthru
      _
    // Predicated region
    $region22: #{tpu_custom_call.1} parent=1 // pred_check
      _
    $region23: #{tpu_custom_call.1} parent=1 // pred_check_branch
      %42 = sbr.rel (0) target = $region25
    $region24: #{tpu_custom_call.1} parent=1 // pred_region
      %43 = dma.done [#allocation6], 8192
    $region25: #{tpu_custom_call.1} parent=1 // pred_fallthru
      _
    %v44 = vld [vmem:[#allocation2] sm:$0xff]
    %v45 = vld [vmem:[#allocation2 + $0x8] sm:$0xff]
    %v46 = vadd.f32 %v44, %v45
    %47 = vadd.xlane.f32.xlu0 %v46
    %v48 = vpop.xlane.xlu0 %47
    %v49 = vmul.f32 %v48, 0.00390625
    %v50 = vsub.f32 %v44, %v49
    %v51 = vsub.f32 %v45, %v49
    %v52 = vmul.f32 %v50, %v50
    %v53 = vmul.f32 %v51, %v51
    %v54 = vadd.f32 %v52, %v53
    %55 = vadd.xlane.f32.xlu0 %v54
    %v56 = vpop.xlane.xlu0 %55
    %v57 = vmul.f32 %v56, 0.003921569
    %v58 = vadd.f32 %v57, 0.0001
    %v59 = vmul.f32 %v58, 4.0
    %v60 = vrcp.pop %v59
    %v61 = vmul.f32 %v52, %v60
    %v62 = vmul.f32 %v53, %v60
    %v63 = vadd.f32 %v61, 0.5
    %v64 = vadd.f32 %v62, 0.5
    %v65 = vmul.f32 %v63, 0.5
    %v66 = vmul.f32 %v64, 0.5
    %v67 = vtanh.pop %v65
    %v68 = vtanh.pop %v66
    %v69 = vmul.f32 %v67, 0.5
    %v70 = vmul.f32 %v68, 0.5
    %v71 = vadd.f32 %v69, 0.5
    %v72 = vadd.f32 %v70, 0.5
    %v73 = vmul.f32 %v44, %v71
    %v74 = vmul.f32 %v45, %v72
    %v75 = vld [vmem:[#allocation5] sm:$0xff]
    %v76 = vld [vmem:[#allocation5 + $0x8] sm:$0xff]
    %v77 = vld [vmem:[#allocation5 + $0x10] sm:$0xff]
    %v78 = vld [vmem:[#allocation5 + $0x18] sm:$0xff]
    %v79 = vld [vmem:[#allocation5 + $0x20] sm:$0xff]
    %v80 = vld [vmem:[#allocation5 + $0x28] sm:$0xff]
    %v81 = vld [vmem:[#allocation5 + $0x30] sm:$0xff]
    %v82 = vld [vmem:[#allocation5 + $0x38] sm:$0xff]
    %v83 = vld [vmem:[#allocation5 + $0x40] sm:$0xff]
    %v84 = vld [vmem:[#allocation5 + $0x48] sm:$0xff]
    %v85 = vld [vmem:[#allocation5 + $0x50] sm:$0xff]
    %v86 = vld [vmem:[#allocation5 + $0x58] sm:$0xff]
    %v87 = vld [vmem:[#allocation5 + $0x60] sm:$0xff]
    %v88 = vld [vmem:[#allocation5 + $0x68] sm:$0xff]
    %v89 = vld [vmem:[#allocation5 + $0x70] sm:$0xff]
    %v90 = vld [vmem:[#allocation5 + $0x78] sm:$0xff]
    %v91 = vld [vmem:[#allocation5 + $0x80] sm:$0xff]
    %v92 = vld [vmem:[#allocation5 + $0x88] sm:$0xff]
    %v93 = vld [vmem:[#allocation5 + $0x90] sm:$0xff]
    %v94 = vld [vmem:[#allocation5 + $0x98] sm:$0xff]
    %v95 = vld [vmem:[#allocation5 + $0xa0] sm:$0xff]
    %v96 = vld [vmem:[#allocation5 + $0xa8] sm:$0xff]
    %v97 = vld [vmem:[#allocation5 + $0xb0] sm:$0xff]
    %v98 = vld [vmem:[#allocation5 + $0xb8] sm:$0xff]
    %v99 = vld [vmem:[#allocation5 + $0xc0] sm:$0xff]
    %v100 = vld [vmem:[#allocation5 + $0xc8] sm:$0xff]
    %v101 = vld [vmem:[#allocation5 + $0xd0] sm:$0xff]
    %v102 = vld [vmem:[#allocation5 + $0xd8] sm:$0xff]
    %v103 = vld [vmem:[#allocation5 + $0xe0] sm:$0xff]
    %v104 = vld [vmem:[#allocation5 + $0xe8] sm:$0xff]
    %v105 = vld [vmem:[#allocation5 + $0xf0] sm:$0xff]
    %v106 = vld [vmem:[#allocation5 + $0xf8] sm:$0xff]
    %v107 = vld [vmem:[#allocation5 + $0x100] sm:$0xff]
    %v108 = vld [vmem:[#allocation5 + $0x108] sm:$0xff]
    %v109 = vld [vmem:[#allocation5 + $0x110] sm:$0xff]
    %v110 = vld [vmem:[#allocation5 + $0x118] sm:$0xff]
    %v111 = vld [vmem:[#allocation5 + $0x120] sm:$0xff]
    %v112 = vld [vmem:[#allocation5 + $0x128] sm:$0xff]
    %v113 = vld [vmem:[#allocation5 + $0x130] sm:$0xff]
    %v114 = vld [vmem:[#allocation5 + $0x138] sm:$0xff]
    %v115 = vld [vmem:[#allocation5 + $0x140] sm:$0xff]
    %v116 = vld [vmem:[#allocation5 + $0x148] sm:$0xff]
    %v117 = vld [vmem:[#allocation5 + $0x150] sm:$0xff]
    %v118 = vld [vmem:[#allocation5 + $0x158] sm:$0xff]
    %v119 = vld [vmem:[#allocation5 + $0x160] sm:$0xff]
    %v120 = vld [vmem:[#allocation5 + $0x168] sm:$0xff]
    %v121 = vld [vmem:[#allocation5 + $0x170] sm:$0xff]
    %v122 = vld [vmem:[#allocation5 + $0x178] sm:$0xff]
    %v123 = vld [vmem:[#allocation5 + $0x180] sm:$0xff]
    %v124 = vld [vmem:[#allocation5 + $0x188] sm:$0xff]
    %v125 = vld [vmem:[#allocation5 + $0x190] sm:$0xff]
    %v126 = vld [vmem:[#allocation5 + $0x198] sm:$0xff]
    %v127 = vld [vmem:[#allocation5 + $0x1a0] sm:$0xff]
    %v128 = vld [vmem:[#allocation5 + $0x1a8] sm:$0xff]
    %v129 = vld [vmem:[#allocation5 + $0x1b0] sm:$0xff]
    %v130 = vld [vmem:[#allocation5 + $0x1b8] sm:$0xff]
    %v131 = vld [vmem:[#allocation5 + $0x1c0] sm:$0xff]
    %v132 = vld [vmem:[#allocation5 + $0x1c8] sm:$0xff]
    %v133 = vld [vmem:[#allocation5 + $0x1d0] sm:$0xff]
    %v134 = vld [vmem:[#allocation5 + $0x1d8] sm:$0xff]
    %v135 = vld [vmem:[#allocation5 + $0x1e0] sm:$0xff]
    %v136 = vld [vmem:[#allocation5 + $0x1e8] sm:$0xff]
    %v137 = vld [vmem:[#allocation5 + $0x1f0] sm:$0xff]
    %v138 = vld [vmem:[#allocation5 + $0x1f8] sm:$0xff]
    %139 = vmatprep.subr.mxu0 %v76
    %140 = vmatpush1.msra.mxu0 %v75
    %141 = vmatprep.subr.mxu0 %v78
    %142 = vmatpush1.msra.mxu0 %v77
    %143 = vmatprep.subr.mxu0 %v80
    %144 = vmatpush1.msra.mxu0 %v79
    %145 = vmatprep.subr.mxu0 %v82
    %146 = vmatpush1.msra.mxu0 %v81
    %147 = vmatprep.subr.mxu0 %v84
    %148 = vmatpush1.msra.mxu0 %v83
    %149 = vmatprep.subr.mxu0 %v86
    %150 = vmatpush1.msra.mxu0 %v85
    %151 = vmatprep.subr.mxu0 %v88
    %152 = vmatpush1.msra.mxu0 %v87
    %153 = vmatprep.subr.mxu0 %v90
    %154 = vmatpush1.msra.mxu0 %v89
    %155 = vmatprep.subr.mxu0 %v92
    %156 = vmatpush1.msra.mxu0 %v91
    %157 = vmatprep.subr.mxu0 %v94
    %158 = vmatpush1.msra.mxu0 %v93
    %159 = vmatprep.subr.mxu0 %v96
    %160 = vmatpush1.msra.mxu0 %v95
    %161 = vmatprep.subr.mxu0 %v98
    %162 = vmatpush1.msra.mxu0 %v97
    %163 = vmatprep.subr.mxu0 %v100
    %164 = vmatpush1.msra.mxu0 %v99
    %165 = vmatprep.subr.mxu0 %v102
    %166 = vmatpush1.msra.mxu0 %v101
    %167 = vmatprep.subr.mxu0 %v104
    %168 = vmatpush1.msra.mxu0 %v103
    %169 = vmatprep.subr.mxu0 %v106
    %170 = vmatpush1.msra.mxu0 %v105
    %171 = vmatprep.subr.mxu0 %v108
    %172 = vmatpush1.msra.mxu0 %v107
    %173 = vmatprep.subr.mxu0 %v110
    %174 = vmatpush1.msra.mxu0 %v109
    %175 = vmatprep.subr.mxu0 %v112
    %176 = vmatpush1.msra.mxu0 %v111
    %177 = vmatprep.subr.mxu0 %v114
    %178 = vmatpush1.msra.mxu0 %v113
    %179 = vmatprep.subr.mxu0 %v116
    %180 = vmatpush1.msra.mxu0 %v115
    %181 = vmatprep.subr.mxu0 %v118
    %182 = vmatpush1.msra.mxu0 %v117
    %183 = vmatprep.subr.mxu0 %v120
    %184 = vmatpush1.msra.mxu0 %v119
    %185 = vmatprep.subr.mxu0 %v122
    %186 = vmatpush1.msra.mxu0 %v121
    %187 = vmatprep.subr.mxu0 %v124
    %188 = vmatpush1.msra.mxu0 %v123
    %189 = vmatprep.subr.mxu0 %v126
    %190 = vmatpush1.msra.mxu0 %v125
    %191 = vmatprep.subr.mxu0 %v128
    %192 = vmatpush1.msra.mxu0 %v127
    %193 = vmatprep.subr.mxu0 %v130
    %194 = vmatpush1.msra.mxu0 %v129
    %195 = vmatprep.subr.mxu0 %v132
    %196 = vmatpush1.msra.mxu0 %v131
    %197 = vmatprep.subr.mxu0 %v134
    %198 = vmatpush1.msra.mxu0 %v133
    %199 = vmatprep.subr.mxu0 %v136
    %200 = vmatpush1.msra.mxu0 %v135
    %201 = vmatprep.subr.mxu0 %v138
    %202 = vmatpush1.msra.mxu0 %v137
    %203 = vmatprep.mubr.f32.mxu0 %v74
    %204 = vmatmul.mubr.f32.gmra.mrb[0].mxu0 %v73
    %v205 = vpop.f32.mrb[0].mxu0
    %v206 = vadd.f32 0.0, %v205
    %v207 = vpop.f32.mrb[0].mxu0
    %v208 = vadd.f32 0.0, %v207
    %209 = vdwg.mxu0
    %v210 = vld [vmem:[%s1] sm:$0xff]
    %v211 = vld [vmem:[%s2] sm:$0xff]
    %213 = vset.pattern.permute.xlu0 0
    %214 = vperm.xlu0 %213, %v211
    %v215 = vpop.permute.xlu0 %214
    %vm217 = vcmask 64512
    %v219 = vsel %vm217, %v210, 0
    %221 = vmatprep.subr.mxu0 %v208
    %222 = vmatpush1.msra.mxu0 %v206
    %223 = vmatprep.subr.mxu0 0.0
    %224 = vmatpush1.msra.mxu0 0.0
    %225 = vmatprep.subr.mxu0 0.0
    %226 = vmatpush1.msra.mxu0 0.0
    %227 = vmatprep.subr.mxu0 0.0
    %228 = vmatpush1.msra.mxu0 0.0
    %229 = vmatprep.subr.mxu0 0.0
    %230 = vmatpush1.msra.mxu0 0.0
    %231 = vmatprep.subr.mxu0 0.0
    %232 = vmatpush1.msra.mxu0 0.0
    %233 = vmatprep.subr.mxu0 0.0
    %234 = vmatpush1.msra.mxu0 0.0
    %235 = vmatprep.subr.mxu0 0.0
    %236 = vmatpush1.msra.mxu0 0.0
    %237 = vmatprep.subr.mxu0 0.0
    %238 = vmatpush1.msra.mxu0 0.0
    %239 = vmatprep.subr.mxu0 0.0
    %240 = vmatpush1.msra.mxu0 0.0
    %241 = vmatprep.subr.mxu0 0.0
    %242 = vmatpush1.msra.mxu0 0.0
    %243 = vmatprep.subr.mxu0 0.0
    %244 = vmatpush1.msra.mxu0 0.0
    %245 = vmatprep.subr.mxu0 0.0
    %246 = vmatpush1.msra.mxu0 0.0
    %247 = vmatprep.subr.mxu0 0.0
    %248 = vmatpush1.msra.mxu0 0.0
    %249 = vmatprep.subr.mxu0 0.0
    %250 = vmatpush1.msra.mxu0 0.0
    %251 = vmatprep.subr.mxu0 0.0
    %252 = vmatpush1.msra.mxu0 0.0
    %253 = vmatprep.subr.mxu0 0.0
    %254 = vmatpush1.msra.mxu0 0.0
    %255 = vmatprep.subr.mxu0 0.0
    %256 = vmatpush1.msra.mxu0 0.0
    %257 = vmatprep.subr.mxu0 0.0
    %258 = vmatpush1.msra.mxu0 0.0
    %259 = vmatprep.subr.mxu0 0.0
    %260 = vmatpush1.msra.mxu0 0.0
    %261 = vmatprep.subr.mxu0 0.0
    %262 = vmatpush1.msra.mxu0 0.0
    %263 = vmatprep.subr.mxu0 0.0
    %264 = vmatpush1.msra.mxu0 0.0
    %265 = vmatprep.subr.mxu0 0.0
    %266 = vmatpush1.msra.mxu0 0.0
    %267 = vmatprep.subr.mxu0 0.0
    %268 = vmatpush1.msra.mxu0 0.0
    %269 = vmatprep.subr.mxu0 0.0
    %270 = vmatpush1.msra.mxu0 0.0
    %271 = vmatprep.subr.mxu0 0.0
    %272 = vmatpush1.msra.mxu0 0.0
    %273 = vmatprep.subr.mxu0 0.0
    %274 = vmatpush1.msra.mxu0 0.0
    %275 = vmatprep.subr.mxu0 0.0
    %276 = vmatpush1.msra.mxu0 0.0
    %277 = vmatprep.subr.mxu0 0.0
    %278 = vmatpush1.msra.mxu0 0.0
    %279 = vmatprep.subr.mxu0 0.0
    %280 = vmatpush1.msra.mxu0 0.0
    %281 = vmatprep.subr.mxu0 0.0
    %282 = vmatpush1.msra.mxu0 0.0
    %283 = vmatprep.subr.mxu0 0.0
    %284 = vmatpush1.msra.mxu0 0.0
    %285 = vmatprep.mubr.f32.mxu0 0.0
    %286 = vmatmul.mubr.f32.gmra.mrb[0].mxu0 %v219
    %v287 = vpop.f32.mrb[0].mxu0
    %v288 = vadd.f32 %v215, %v287
    %v289 = vpop.f32.mrb[0].mxu0
    %v290 = vadd.f32 %v215, %v289
    %291 = vdwg.mxu0
    %v292 = vmul.f32 %v288, 0.5
    %v293 = vmul.f32 %v290, 0.5
    %v294 = vtanh.pop %v292
    %v295 = vtanh.pop %v293
    %v296 = vmul.f32 %v294, 0.5
    %v297 = vmul.f32 %v295, 0.5
    %v298 = vadd.f32 %v296, 0.5
    %v299 = vadd.f32 %v297, 0.5
    %v300 = vadd.f32 %v298, 1.0
    %v301 = vadd.f32 %v299, 1.0
    %v302 = vmul.f32 %v300, %v73
    %v303 = vmul.f32 %v301, %v74
    %v304 = vadd.f32 %v302, %v303
    %305 = vadd.xlane.f32.xlu0 %v304
    %v306 = vpop.xlane.xlu0 %305
    %v307 = vmul.f32 %v306, 0.00390625
    %v308 = vsub.f32 %v302, %v307
    %v309 = vsub.f32 %v303, %v307
    %v310 = vmul.f32 %v308, %v308
    %v311 = vmul.f32 %v309, %v309
    %v312 = vadd.f32 %v310, %v311
    %313 = vadd.xlane.f32.xlu0 %v312
    %v314 = vpop.xlane.xlu0 %313
    %v315 = vmul.f32 %v314, 0.003921569
    %v316 = vadd.f32 %v315, 0.0001
    %v317 = vmul.f32 %v316, 4.0
    %v318 = vrcp.pop %v317
    %v319 = vmul.f32 %v310, %v318
    %v320 = vmul.f32 %v311, %v318
    %v321 = vadd.f32 %v319, 0.5
    %v322 = vadd.f32 %v320, 0.5
    %v323 = vmul.f32 %v321, 0.5
    %v324 = vmul.f32 %v322, 0.5
    %v325 = vtanh.pop %v323
    %v326 = vtanh.pop %v324
    %v327 = vmul.f32 %v325, 0.5
    %v328 = vmul.f32 %v326, 0.5
    %v329 = vadd.f32 %v327, 0.5
    %v330 = vadd.f32 %v328, 0.5
    %v331 = vmul.f32 %v302, %v329
    %v332 = vmul.f32 %v303, %v330
    %333 = vst [vmem:[#allocation7] sm:$0xff] %v331
    %334 = vst [vmem:[#allocation7 + $0x8] sm:$0xff] %v332
    // Predicated region
    $region26: #{tpu_custom_call.1} parent=1 // pred_check
      _
    $region27: #{tpu_custom_call.1} parent=1 // pred_check_branch
      %336 = sbr.rel (0) target = $region29
    $region28: #{tpu_custom_call.1} parent=1 // pred_region
      %s338 = ssub.s32 256, 256
      %339 = vsyncadd [#allocation4], %s338
      %s341 = sshll.u32 [#allocation7], 4
      %s342 = int_to_ptr.vmem [resolvable:$true] %s341
      %344 = dma.vmem_to_hbm [thread:$0]  %s342, 256, %s4, [#allocation4]
    $region29: #{tpu_custom_call.1} parent=1 // pred_fallthru
      _
    // Predicated region
    $region30: #{tpu_custom_call.1} parent=1 // pred_check
      _
    $region31: #{tpu_custom_call.1} parent=1 // pred_check_branch
      %346 = sbr.rel (0) target = $region33
    $region32: #{tpu_custom_call.1} parent=1 // pred_region
      %347 = dma.done [#allocation4], 256
    $region33: #{tpu_custom_call.1} parent=1 // pred_fallthru
      _
    %348 = vsyncpa [#allocation3], 1
    %349 = vsyncpa [#allocation6], 1
    %350 = vsyncpa [#allocation4], 1

</llo_original>
